<compile_context>
chip_gen: v7x
topology: tpu7x:2x2x1
jax: 0.10.0
libtpu: 0.0.40
codegen_flags: <defaults>
</compile_context>

<pallas_src>
import jax
import jax.numpy as jnp
from jax.experimental import pallas as pl
from jax.experimental.pallas import tpu as pltpu


def _fused_net_kernel(p1_ref, w1_ref, w2_ref, w3_ref,
                      y1_ref, y2_ref, y3_ref):
    """conv1 -> conv2 -> conv3, entirely in VMEM.

    p1_ref : [TAPS*R2, Cin*K1*K1]  conv1 patches, rows ordered (tap, n, a, b)
    w1_ref : [Cin*K1*K1, C1]       conv1 weights, GEMM layout
    w2_ref : [TAPS, C1, C2]        conv2 weights, per-tap (kh*k2+kw major)
    w3_ref : [C2, C3]              conv3 weights, GEMM layout
    y1_ref : [TAPS*R2, C1]         conv1 output (tap-major rows)
    y2_ref : [R2, C2]              conv2 output (rows = (n, a, b))
    y3_ref : [R2, C3]              conv3 output (rows = (n, a, b))
    """
    taps = w2_ref.shape[0]
    r2 = y2_ref.shape[0]

    # conv1: single GEMM; result stays VMEM-resident for conv2.
    y1 = jnp.dot(p1_ref[...], w1_ref[...], preferred_element_type=jnp.float32)
    y1_ref[...] = y1

    # conv2: rows of y1 are grouped by conv2 tap (kh, kw); accumulate the
    # per-tap channel GEMMs.  Slices are static and 8-row aligned.
    acc = jnp.dot(y1[0:r2, :], w2_ref[0], preferred_element_type=jnp.float32)
    for p in range(1, taps):
        acc = acc + jnp.dot(y1[p * r2:(p + 1) * r2, :], w2_ref[p],
                            preferred_element_type=jnp.float32)
    y2_ref[...] = acc

    # conv3: 1x1 stride-1 conv == channel GEMM on the VMEM-resident conv2 out.
    y3_ref[...] = jnp.dot(acc, w3_ref[...], preferred_element_type=jnp.float32)


def prepack_weights(w1, w2, w3):
    """One-time layout plumbing: PyTorch OIHW -> GEMM-ready matrices."""
    c1, cin, k1, _ = w1.shape
    c2, c1b, k2, _ = w2.shape
    c3, c2b, k3, _ = w3.shape
    assert c1b == c1 and c2b == c2 and k3 == 1
    w1p = jnp.asarray(w1, jnp.float32).reshape(c1, cin * k1 * k1).T        # [Cin*K1*K1, C1]
    w2p = jnp.asarray(w2, jnp.float32).transpose(2, 3, 1, 0)               # (kh, kw, cin, cout)
    w2p = w2p.reshape(k2 * k2, c1, c2)                                     # [taps, C1, C2]
    w3p = jnp.asarray(w3, jnp.float32).reshape(c3, c2).T                   # [C2, C3]
    return w1p, w2p, w3p


@jax.jit
def net_forward(x, w1, w2, w3):
    n, cin, h, wdt = x.shape
    c1, _, k1, _ = w1.shape
    c2, _, k2, _ = w2.shape
    c3, _, _, _ = w3.shape
    oh1, ow1 = h // k1, wdt // k1
    oh2, ow2 = oh1 // k2, ow1 // k2
    # Fused kernel assumes conv2 consumes all of conv1's output rows.
    assert oh1 == oh2 * k2 and ow1 == ow2 * k2, "spatial dims must tile exactly"

    taps = k2 * k2
    r2 = n * oh2 * ow2          # conv2/conv3 output rows
    r1 = taps * r2              # conv1 output rows
    ckk1 = cin * k1 * k1

    w1p, w2p, w3p = prepack_weights(w1, w2, w3)

    # conv1 patch extraction; rows ordered (kh2, kw2, n, a, b) so each conv2
    # tap owns a contiguous, 8-row-aligned row group inside the kernel.
    xf = jnp.asarray(x, jnp.float32)
    x8 = xf[:, :, :oh2 * k2 * k1, :ow2 * k2 * k1].reshape(
        n, cin, oh2, k2, k1, ow2, k2, k1)        # (n, cin, a, kh, r, b, kw, s)
    p1 = x8.transpose(3, 6, 0, 2, 5, 1, 4, 7).reshape(r1, ckk1)

    flops = 2 * (r1 * ckk1 * c1 + taps * r2 * c1 * c2 + r2 * c2 * c3)
    bytes_accessed = 4 * (r1 * ckk1 + ckk1 * c1 + taps * c1 * c2 + c2 * c3
                          + r1 * c1 + r2 * c2 + r2 * c3)

    y1, y2, y3 = pl.pallas_call(
        _fused_net_kernel,
        out_shape=(
            jax.ShapeDtypeStruct((r1, c1), jnp.float32),
            jax.ShapeDtypeStruct((r2, c2), jnp.float32),
            jax.ShapeDtypeStruct((r2, c3), jnp.float32),
        ),
        in_specs=[pl.BlockSpec(memory_space=pltpu.MemorySpace.VMEM)] * 4,
        out_specs=(pl.BlockSpec(memory_space=pltpu.MemorySpace.VMEM),) * 3,
        cost_estimate=pl.CostEstimate(
            flops=flops, transcendentals=0, bytes_accessed=bytes_accessed),
    )(p1, w1p, w2p, w3p)

    # Patch-major -> NCHW, done once at the very end (spec returns NCHW).
    x1 = y1.reshape(k2, k2, n, oh2, ow2, c1).transpose(2, 5, 3, 0, 4, 1)
    x1 = x1.reshape(n, c1, oh1, ow1)
    x2 = y2.reshape(n, oh2, ow2, c2).transpose(0, 3, 1, 2)
    x3 = y3.reshape(n, oh2, ow2, c3).transpose(0, 3, 1, 2)
    return x1, x2, x3


def _init_weight(key, cout, cin, k):
    # Deterministic init (PyTorch-style uniform bound 1/sqrt(fan_in)).
    fan_in = cin * k * k
    bound = 1.0 / jnp.sqrt(jnp.float32(fan_in))
    return jax.random.uniform(key, (cout, cin, k, k), jnp.float32,
                              minval=-bound, maxval=bound)


def _ref_conv(x, w, stride):
    return jax.lax.conv_general_dilated(
        x, w, window_strides=(stride, stride), padding="VALID",
        dimension_numbers=("NCHW", "OIHW", "NCHW"))


if __name__ == "__main__":
    key = jax.random.PRNGKey(0)
    kx, k1, k2, k3 = jax.random.split(key, 4)

    # Small input consistent with the module: N=2, C=3, 30x30 spatial
    # -> x1: [2,64,6,6], x2: [2,64,2,2], x3: [2,16,2,2]
    x = jax.random.normal(kx, (2, 3, 30, 30), jnp.float32)
    w1 = _init_weight(k1, 64, 3, 5)
    w2 = _init_weight(k2, 64, 64, 3)
    w3 = _init_weight(k3, 16, 64, 1)

    x1, x2, x3 = net_forward(x, w1, w2, w3)
    jax.block_until_ready((x1, x2, x3))

    # Sanity check against XLA's conv (reference semantics of the PyTorch net).
    r1 = _ref_conv(x, w1, 5)
    r2 = _ref_conv(r1, w2, 3)
    r3 = _ref_conv(r2, w3, 1)
    assert x1.shape == (2, 64, 6, 6)
    assert x2.shape == (2, 64, 2, 2)
    assert x3.shape == (2, 16, 2, 2)
    assert jnp.allclose(x1, r1, atol=1e-4, rtol=1e-4)
    assert jnp.allclose(x2, r2, atol=1e-4, rtol=1e-4)
    assert jnp.allclose(x3, r3, atol=1e-4, rtol=1e-4)

    print("KERNEL_OK")
</pallas_src>

<mosaic_0001>
module attributes {stable_mosaic.version = 11 : i64} {
  func.func @_fused_net_kernel(%arg0: memref<72x75xf32, #tpu.memory_space<vmem>>, %arg1: memref<75x64xf32, #tpu.memory_space<vmem>>, %arg2: memref<9x64x64xf32, #tpu.memory_space<vmem>>, %arg3: memref<64x16xf32, #tpu.memory_space<vmem>>, %arg4: memref<72x64xf32, #tpu.memory_space<vmem>>, %arg5: memref<8x64xf32, #tpu.memory_space<vmem>>, %arg6: memref<8x16xf32, #tpu.memory_space<vmem>>) attributes {dimension_semantics = [], scalar_prefetch = 0 : i64, scratch_operands = 0 : i64, tpu.core_type = #tpu.core_type<tc>} {
    %c0 = arith.constant 0 : index
    %c0_0 = arith.constant 0 : index
    %0 = vector.load %arg0[%c0, %c0_0] : memref<72x75xf32, #tpu.memory_space<vmem>>, vector<72x75xf32>
    %c0_1 = arith.constant 0 : index
    %c0_2 = arith.constant 0 : index
    %1 = vector.load %arg1[%c0_1, %c0_2] : memref<75x64xf32, #tpu.memory_space<vmem>>, vector<75x64xf32>
    %cst = arith.constant dense<0.000000e+00> : vector<72x64xf32>
    %2 = tpu.matmul %0, %1, %cst {dimension_numbers = #tpu.dot_dimension_numbers<[1], [0], [0], [1], [0, 0, 1, 1], [], []>} : vector<72x75xf32>, vector<75x64xf32>, vector<72x64xf32> -> vector<72x64xf32>
    %c0_3 = arith.constant 0 : index
    %c0_4 = arith.constant 0 : index
    %3 = vector.load %arg4[%c0_3, %c0_4] : memref<72x64xf32, #tpu.memory_space<vmem>>, vector<72x64xf32>
    tpu.vector_store %arg4[%c0_3, %c0_4], %2 {strides = array<i32>} : memref<72x64xf32, #tpu.memory_space<vmem>>, vector<72x64xf32>,
    %4 = vector.extract_strided_slice %2 {offsets = [0, 0], sizes = [8, 64], strides = [1, 1]} : vector<72x64xf32> to vector<8x64xf32>
    %c0_5 = arith.constant 0 : index
    %c0_6 = arith.constant 0 : index
    %c0_7 = arith.constant 0 : index
    %5 = vector.load %arg2[%c0_5, %c0_6, %c0_7] : memref<9x64x64xf32, #tpu.memory_space<vmem>>, vector<1x64x64xf32>
    %6 = vector.shape_cast %5 : vector<1x64x64xf32> to vector<64x64xf32>
    %cst_8 = arith.constant dense<0.000000e+00> : vector<8x64xf32>
    %7 = tpu.matmul %4, %6, %cst_8 {dimension_numbers = #tpu.dot_dimension_numbers<[1], [0], [0], [1], [0, 0, 1, 1], [], []>} : vector<8x64xf32>, vector<64x64xf32>, vector<8x64xf32> -> vector<8x64xf32>
    %8 = vector.extract_strided_slice %2 {offsets = [8, 0], sizes = [8, 64], strides = [1, 1]} : vector<72x64xf32> to vector<8x64xf32>
    %c1 = arith.constant 1 : index
    %c0_9 = arith.constant 0 : index
    %c0_10 = arith.constant 0 : index
    %9 = vector.load %arg2[%c1, %c0_9, %c0_10] : memref<9x64x64xf32, #tpu.memory_space<vmem>>, vector<1x64x64xf32>
    %10 = vector.shape_cast %9 : vector<1x64x64xf32> to vector<64x64xf32>
    %cst_11 = arith.constant dense<0.000000e+00> : vector<8x64xf32>
    %11 = tpu.matmul %8, %10, %cst_11 {dimension_numbers = #tpu.dot_dimension_numbers<[1], [0], [0], [1], [0, 0, 1, 1], [], []>} : vector<8x64xf32>, vector<64x64xf32>, vector<8x64xf32> -> vector<8x64xf32>
    %12 = arith.addf %7, %11 : vector<8x64xf32>
    %13 = vector.extract_strided_slice %2 {offsets = [16, 0], sizes = [8, 64], strides = [1, 1]} : vector<72x64xf32> to vector<8x64xf32>
    %c2 = arith.constant 2 : index
    %c0_12 = arith.constant 0 : index
    %c0_13 = arith.constant 0 : index
    %14 = vector.load %arg2[%c2, %c0_12, %c0_13] : memref<9x64x64xf32, #tpu.memory_space<vmem>>, vector<1x64x64xf32>
    %15 = vector.shape_cast %14 : vector<1x64x64xf32> to vector<64x64xf32>
    %cst_14 = arith.constant dense<0.000000e+00> : vector<8x64xf32>
    %16 = tpu.matmul %13, %15, %cst_14 {dimension_numbers = #tpu.dot_dimension_numbers<[1], [0], [0], [1], [0, 0, 1, 1], [], []>} : vector<8x64xf32>, vector<64x64xf32>, vector<8x64xf32> -> vector<8x64xf32>
    %17 = arith.addf %12, %16 : vector<8x64xf32>
    %18 = vector.extract_strided_slice %2 {offsets = [24, 0], sizes = [8, 64], strides = [1, 1]} : vector<72x64xf32> to vector<8x64xf32>
    %c3 = arith.constant 3 : index
    %c0_15 = arith.constant 0 : index
    %c0_16 = arith.constant 0 : index
    %19 = vector.load %arg2[%c3, %c0_15, %c0_16] : memref<9x64x64xf32, #tpu.memory_space<vmem>>, vector<1x64x64xf32>
    %20 = vector.shape_cast %19 : vector<1x64x64xf32> to vector<64x64xf32>
    %cst_17 = arith.constant dense<0.000000e+00> : vector<8x64xf32>
    %21 = tpu.matmul %18, %20, %cst_17 {dimension_numbers = #tpu.dot_dimension_numbers<[1], [0], [0], [1], [0, 0, 1, 1], [], []>} : vector<8x64xf32>, vector<64x64xf32>, vector<8x64xf32> -> vector<8x64xf32>
    %22 = arith.addf %17, %21 : vector<8x64xf32>
    %23 = vector.extract_strided_slice %2 {offsets = [32, 0], sizes = [8, 64], strides = [1, 1]} : vector<72x64xf32> to vector<8x64xf32>
    %c4 = arith.constant 4 : index
    %c0_18 = arith.constant 0 : index
    %c0_19 = arith.constant 0 : index
    %24 = vector.load %arg2[%c4, %c0_18, %c0_19] : memref<9x64x64xf32, #tpu.memory_space<vmem>>, vector<1x64x64xf32>
    %25 = vector.shape_cast %24 : vector<1x64x64xf32> to vector<64x64xf32>
    %cst_20 = arith.constant dense<0.000000e+00> : vector<8x64xf32>
    %26 = tpu.matmul %23, %25, %cst_20 {dimension_numbers = #tpu.dot_dimension_numbers<[1], [0], [0], [1], [0, 0, 1, 1], [], []>} : vector<8x64xf32>, vector<64x64xf32>, vector<8x64xf32> -> vector<8x64xf32>
    %27 = arith.addf %22, %26 : vector<8x64xf32>
    %28 = vector.extract_strided_slice %2 {offsets = [40, 0], sizes = [8, 64], strides = [1, 1]} : vector<72x64xf32> to vector<8x64xf32>
    %c5 = arith.constant 5 : index
    %c0_21 = arith.constant 0 : index
    %c0_22 = arith.constant 0 : index
    %29 = vector.load %arg2[%c5, %c0_21, %c0_22] : memref<9x64x64xf32, #tpu.memory_space<vmem>>, vector<1x64x64xf32>
    %30 = vector.shape_cast %29 : vector<1x64x64xf32> to vector<64x64xf32>
    %cst_23 = arith.constant dense<0.000000e+00> : vector<8x64xf32>
    %31 = tpu.matmul %28, %30, %cst_23 {dimension_numbers = #tpu.dot_dimension_numbers<[1], [0], [0], [1], [0, 0, 1, 1], [], []>} : vector<8x64xf32>, vector<64x64xf32>, vector<8x64xf32> -> vector<8x64xf32>
    %32 = arith.addf %27, %31 : vector<8x64xf32>
    %33 = vector.extract_strided_slice %2 {offsets = [48, 0], sizes = [8, 64], strides = [1, 1]} : vector<72x64xf32> to vector<8x64xf32>
    %c6 = arith.constant 6 : index
    %c0_24 = arith.constant 0 : index
    %c0_25 = arith.constant 0 : index
    %34 = vector.load %arg2[%c6, %c0_24, %c0_25] : memref<9x64x64xf32, #tpu.memory_space<vmem>>, vector<1x64x64xf32>
    %35 = vector.shape_cast %34 : vector<1x64x64xf32> to vector<64x64xf32>
    %cst_26 = arith.constant dense<0.000000e+00> : vector<8x64xf32>
    %36 = tpu.matmul %33, %35, %cst_26 {dimension_numbers = #tpu.dot_dimension_numbers<[1], [0], [0], [1], [0, 0, 1, 1], [], []>} : vector<8x64xf32>, vector<64x64xf32>, vector<8x64xf32> -> vector<8x64xf32>
    %37 = arith.addf %32, %36 : vector<8x64xf32>
    %38 = vector.extract_strided_slice %2 {offsets = [56, 0], sizes = [8, 64], strides = [1, 1]} : vector<72x64xf32> to vector<8x64xf32>
    %c7 = arith.constant 7 : index
    %c0_27 = arith.constant 0 : index
    %c0_28 = arith.constant 0 : index
    %39 = vector.load %arg2[%c7, %c0_27, %c0_28] : memref<9x64x64xf32, #tpu.memory_space<vmem>>, vector<1x64x64xf32>
    %40 = vector.shape_cast %39 : vector<1x64x64xf32> to vector<64x64xf32>
    %cst_29 = arith.constant dense<0.000000e+00> : vector<8x64xf32>
    %41 = tpu.matmul %38, %40, %cst_29 {dimension_numbers = #tpu.dot_dimension_numbers<[1], [0], [0], [1], [0, 0, 1, 1], [], []>} : vector<8x64xf32>, vector<64x64xf32>, vector<8x64xf32> -> vector<8x64xf32>
    %42 = arith.addf %37, %41 : vector<8x64xf32>
    %43 = vector.extract_strided_slice %2 {offsets = [64, 0], sizes = [8, 64], strides = [1, 1]} : vector<72x64xf32> to vector<8x64xf32>
    %c8 = arith.constant 8 : index
    %c0_30 = arith.constant 0 : index
    %c0_31 = arith.constant 0 : index
    %44 = vector.load %arg2[%c8, %c0_30, %c0_31] : memref<9x64x64xf32, #tpu.memory_space<vmem>>, vector<1x64x64xf32>
    %45 = vector.shape_cast %44 : vector<1x64x64xf32> to vector<64x64xf32>
    %cst_32 = arith.constant dense<0.000000e+00> : vector<8x64xf32>
    %46 = tpu.matmul %43, %45, %cst_32 {dimension_numbers = #tpu.dot_dimension_numbers<[1], [0], [0], [1], [0, 0, 1, 1], [], []>} : vector<8x64xf32>, vector<64x64xf32>, vector<8x64xf32> -> vector<8x64xf32>
    %47 = arith.addf %42, %46 : vector<8x64xf32>
    %c0_33 = arith.constant 0 : index
    %c0_34 = arith.constant 0 : index
    %48 = vector.load %arg5[%c0_33, %c0_34] : memref<8x64xf32, #tpu.memory_space<vmem>>, vector<8x64xf32>
    tpu.vector_store %arg5[%c0_33, %c0_34], %47 {strides = array<i32>} : memref<8x64xf32, #tpu.memory_space<vmem>>, vector<8x64xf32>,
    %c0_35 = arith.constant 0 : index
    %c0_36 = arith.constant 0 : index
    %49 = vector.load %arg3[%c0_35, %c0_36] : memref<64x16xf32, #tpu.memory_space<vmem>>, vector<64x16xf32>
    %cst_37 = arith.constant dense<0.000000e+00> : vector<8x16xf32>
    %50 = tpu.matmul %47, %49, %cst_37 {dimension_numbers = #tpu.dot_dimension_numbers<[1], [0], [0], [1], [0, 0, 1, 1], [], []>} : vector<8x64xf32>, vector<64x16xf32>, vector<8x16xf32> -> vector<8x16xf32>
    %c0_38 = arith.constant 0 : index
    %c0_39 = arith.constant 0 : index
    %51 = vector.load %arg6[%c0_38, %c0_39] : memref<8x16xf32, #tpu.memory_space<vmem>>, vector<8x16xf32>
    tpu.vector_store %arg6[%c0_38, %c0_39], %50 {strides = array<i32>} : memref<8x16xf32, #tpu.memory_space<vmem>>, vector<8x16xf32>,
    return
  }
}

</mosaic_0001>

<llo_original>
// kernel: net_forward.1
$region0: #{net_forward.1}
  #allocation0 [shape = 'u32[]', space=smem, size = 0x4, offset = 0x4, fixed_abs, tag = 'smem constant byte address 0x4 - core index']
  #allocation1 [shape = 'u32[144,128]{1,0:T(1,128)}', space=vmem, size = 0x12000, scoped, tag = 'internal scratch']
  %s0 = inlined_call_operand.vmem [shape: f32[72,75], index: 0, kind: input, shape index: {}]
  %s1 = inlined_call_operand.vmem [shape: f32[75,64], index: 1, kind: input, shape index: {}]
  %s2 = inlined_call_operand.vmem [shape: f32[9,64,64], index: 2, kind: input, shape index: {}]
  %s3 = inlined_call_operand.vmem [shape: f32[64,16], index: 3, kind: input, shape index: {}]
  %s4 = inlined_call_operand.vmem [shape: f32[72,64], index: 4, kind: output, shape index: {0}]
  %s5 = inlined_call_operand.hbm [shape: f32[8,64], index: 5, kind: output, shape index: {1}]
  %s6 = inlined_call_operand.hbm [shape: f32[8,16], index: 6, kind: output, shape index: {2}]
  %7 = xla_tuple %s4, %s5, %s6
  %s8 = sld [smem:[#allocation0]]
  $region42: #{net_forward.1} parent=0
    _
  %s10 = ssub.s32 1, %s8
  %s11 = scalar_select 0, %s10, %s8
  $region1: #{net_forward.1} parent=0
    #allocation2 [shape = 'u8[4096]{0}', space=vmem, size = 0x1000, scoped, tag = 'output window, operand 1, single buffered']
    #allocation3 [shape = 's32[1]{0}', space=sflag, size = 0x4, scoped, tag = 'scoped memory for net_forward.1']
    #allocation4 [shape = 'u8[4096]{0}', space=vmem, size = 0x1000, scoped, tag = 'output window, operand 2, single buffered']
    #allocation5 [shape = 's32[1]{0}', space=sflag, size = 0x4, scoped, tag = 'scoped memory for net_forward.1']
    %12 = vsyncpa [#allocation3], 0
    %13 = vsyncpa [#allocation5], 0
    // Predicated region
    $region2: #{net_forward.1} parent=1 // pred_check
      _
    $region3: #{net_forward.1} parent=1 // pred_check_branch
      %15 = sbr.rel (0) target = $region5
    $region4: #{net_forward.1} parent=1 // pred_region
      _
    $region5: #{net_forward.1} parent=1 // pred_fallthru
      _
    // Predicated region
    $region6: #{net_forward.1} parent=1 // pred_check
      _
    $region7: #{net_forward.1} parent=1 // pred_check_branch
      %17 = sbr.rel (0) target = $region9
    $region8: #{net_forward.1} parent=1 // pred_region
      _
    $region9: #{net_forward.1} parent=1 // pred_fallthru
      _
    // Predicated region
    $region10: #{net_forward.1} parent=1 // pred_check
      _
    $region11: #{net_forward.1} parent=1 // pred_check_branch
      %19 = sbr.rel (0) target = $region13
    $region12: #{net_forward.1} parent=1 // pred_region
      _
    $region13: #{net_forward.1} parent=1 // pred_fallthru
      _
    // Predicated region
    $region14: #{net_forward.1} parent=1 // pred_check
      _
    $region15: #{net_forward.1} parent=1 // pred_check_branch
      %21 = sbr.rel (0) target = $region17
    $region16: #{net_forward.1} parent=1 // pred_region
      _
    $region17: #{net_forward.1} parent=1 // pred_fallthru
      _
    %v22 = vld [vmem:[%s0] sm:$0xff]
    %v23 = vld [vmem:[%s0 + $0x8] sm:$0xff]
    %v24 = vld [vmem:[%s0 + $0x10] sm:$0xff]
    %v25 = vld [vmem:[%s0 + $0x18] sm:$0xff]
    %v26 = vld [vmem:[%s0 + $0x20] sm:$0xff]
    %v27 = vld [vmem:[%s0 + $0x28] sm:$0xff]
    %v28 = vld [vmem:[%s0 + $0x30] sm:$0xff]
    %v29 = vld [vmem:[%s0 + $0x38] sm:$0xff]
    %v30 = vld [vmem:[%s0 + $0x40] sm:$0xff]
    %v31 = vld [vmem:[%s1] sm:$0xff]
    %v32 = vld [vmem:[%s1 + $0x8] sm:$0xff]
    %v33 = vld [vmem:[%s1 + $0x10] sm:$0xff]
    %v34 = vld [vmem:[%s1 + $0x18] sm:$0xff]
    %v35 = vld [vmem:[%s1 + $0x20] sm:$0xff]
    %v36 = vld [vmem:[%s1 + $0x28] sm:$0xff]
    %v37 = vld [vmem:[%s1 + $0x30] sm:$0xff]
    %v38 = vld [vmem:[%s1 + $0x38] sm:$0xff]
    %v39 = vld [vmem:[%s1 + $0x40] sm:$0xff]
    %v40 = vld [vmem:[%s1 + $0x48] sm:$0x7]
    %vm41 = vcmask 613376
    %v43 = vsel %vm41, %v22, 0
    %v46 = vsel %vm41, %v23, 0
    %v49 = vsel %vm41, %v24, 0
    %v52 = vsel %vm41, %v25, 0
    %v55 = vsel %vm41, %v26, 0
    %v58 = vsel %vm41, %v27, 0
    %v61 = vsel %vm41, %v28, 0
    %v64 = vsel %vm41, %v29, 0
    %v67 = vsel %vm41, %v30, 0
    %vm69 = vcmask 1042432
    %v71 = vsel %vm69, %v40, 0
    %73 = vmatprep.subr.mxu0 0.0
    %74 = vmatpush1.msra.mxu0 %v31
    %75 = vmatprep.subr.mxu0 0.0
    %76 = vmatpush1.msra.mxu0 %v32
    %77 = vmatprep.subr.mxu0 0.0
    %78 = vmatpush1.msra.mxu0 %v33
    %79 = vmatprep.subr.mxu0 0.0
    %80 = vmatpush1.msra.mxu0 %v34
    %81 = vmatprep.subr.mxu0 0.0
    %82 = vmatpush1.msra.mxu0 %v35
    %83 = vmatprep.subr.mxu0 0.0
    %84 = vmatpush1.msra.mxu0 %v36
    %85 = vmatprep.subr.mxu0 0.0
    %86 = vmatpush1.msra.mxu0 %v37
    %87 = vmatprep.subr.mxu0 0.0
    %88 = vmatpush1.msra.mxu0 %v38
    %89 = vmatprep.subr.mxu0 0.0
    %90 = vmatpush1.msra.mxu0 %v39
    %91 = vmatprep.subr.mxu0 0.0
    %92 = vmatpush1.msra.mxu0 %v71
    %93 = vmatprep.subr.mxu0 0.0
    %94 = vmatpush1.msra.mxu0 0.0
    %95 = vmatprep.subr.mxu0 0.0
    %96 = vmatpush1.msra.mxu0 0.0
    %97 = vmatprep.subr.mxu0 0.0
    %98 = vmatpush1.msra.mxu0 0.0
    %99 = vmatprep.subr.mxu0 0.0
    %100 = vmatpush1.msra.mxu0 0.0
    %101 = vmatprep.subr.mxu0 0.0
    %102 = vmatpush1.msra.mxu0 0.0
    %103 = vmatprep.subr.mxu0 0.0
    %104 = vmatpush1.msra.mxu0 0.0
    %105 = vmatprep.subr.mxu0 0.0
    %106 = vmatpush1.msra.mxu0 0.0
    %107 = vmatprep.subr.mxu0 0.0
    %108 = vmatpush1.msra.mxu0 0.0
    %109 = vmatprep.subr.mxu0 0.0
    %110 = vmatpush1.msra.mxu0 0.0
    %111 = vmatprep.subr.mxu0 0.0
    %112 = vmatpush1.msra.mxu0 0.0
    %113 = vmatprep.subr.mxu0 0.0
    %114 = vmatpush1.msra.mxu0 0.0
    %115 = vmatprep.subr.mxu0 0.0
    %116 = vmatpush1.msra.mxu0 0.0
    %117 = vmatprep.subr.mxu0 0.0
    %118 = vmatpush1.msra.mxu0 0.0
    %119 = vmatprep.subr.mxu0 0.0
    %120 = vmatpush1.msra.mxu0 0.0
    %121 = vmatprep.subr.mxu0 0.0
    %122 = vmatpush1.msra.mxu0 0.0
    %123 = vmatprep.subr.mxu0 0.0
    %124 = vmatpush1.msra.mxu0 0.0
    %125 = vmatprep.subr.mxu0 0.0
    %126 = vmatpush1.msra.mxu0 0.0
    %127 = vmatprep.subr.mxu0 0.0
    %128 = vmatpush1.msra.mxu0 0.0
    %129 = vmatprep.subr.mxu0 0.0
    %130 = vmatpush1.msra.mxu0 0.0
    %131 = vmatprep.subr.mxu0 0.0
    %132 = vmatpush1.msra.mxu0 0.0
    %133 = vmatprep.subr.mxu0 0.0
    %134 = vmatpush1.msra.mxu0 0.0
    %135 = vmatprep.subr.mxu0 0.0
    %136 = vmatpush1.msra.mxu0 0.0
    %137 = vmatprep.mubr.f32.mxu0 0.0
    %138 = vmatmul.mubr.f32.gmra.mrb[0].mxu0 %v43
    %v139 = vpop.f32.mrb[0].mxu0
    %v140 = vadd.f32 0.0, %v139
    %v141 = vpop.f32.mrb[0].mxu0
    %142 = vmatprep.mubr.f32.mxu0 0.0
    %143 = vmatmul.mubr.f32.gmra.mrb[0].mxu0 %v46
    %v144 = vpop.f32.mrb[0].mxu0
    %v145 = vadd.f32 0.0, %v144
    %v146 = vpop.f32.mrb[0].mxu0
    %147 = vmatprep.mubr.f32.mxu0 0.0
    %148 = vmatmul.mubr.f32.gmra.mrb[0].mxu0 %v49
    %v149 = vpop.f32.mrb[0].mxu0
    %v150 = vadd.f32 0.0, %v149
    %v151 = vpop.f32.mrb[0].mxu0
    %152 = vmatprep.mubr.f32.mxu0 0.0
    %153 = vmatmul.mubr.f32.gmra.mrb[0].mxu0 %v52
    %v154 = vpop.f32.mrb[0].mxu0
    %v155 = vadd.f32 0.0, %v154
    %v156 = vpop.f32.mrb[0].mxu0
    %157 = vmatprep.mubr.f32.mxu0 0.0
    %158 = vmatmul.mubr.f32.gmra.mrb[0].mxu0 %v55
    %v159 = vpop.f32.mrb[0].mxu0
    %v160 = vadd.f32 0.0, %v159
    %v161 = vpop.f32.mrb[0].mxu0
    %162 = vmatprep.mubr.f32.mxu0 0.0
    %163 = vmatmul.mubr.f32.gmra.mrb[0].mxu0 %v58
    %v164 = vpop.f32.mrb[0].mxu0
    %v165 = vadd.f32 0.0, %v164
    %v166 = vpop.f32.mrb[0].mxu0
    %167 = vmatprep.mubr.f32.mxu0 0.0
    %168 = vmatmul.mubr.f32.gmra.mrb[0].mxu0 %v61
    %v169 = vpop.f32.mrb[0].mxu0
    %v170 = vadd.f32 0.0, %v169
    %v171 = vpop.f32.mrb[0].mxu0
    %172 = vmatprep.mubr.f32.mxu0 0.0
    %173 = vmatmul.mubr.f32.gmra.mrb[0].mxu0 %v64
    %v174 = vpop.f32.mrb[0].mxu0
    %v175 = vadd.f32 0.0, %v174
    %v176 = vpop.f32.mrb[0].mxu0
    %177 = vmatprep.mubr.f32.mxu0 0.0
    %178 = vmatmul.mubr.f32.gmra.mrb[0].mxu0 %v67
    %v179 = vpop.f32.mrb[0].mxu0
    %v180 = vadd.f32 0.0, %v179
    %v181 = vpop.f32.mrb[0].mxu0
    %182 = vdwg.mxu0
    %vm183 = vcmask 523264
    %184 = vst.msk [vmem:[%s4] sm:$0xff] %vm183, %v140
    %185 = vst.msk [vmem:[%s4 + $0x8] sm:$0xff] %vm183, %v145
    %186 = vst.msk [vmem:[%s4 + $0x10] sm:$0xff] %vm183, %v150
    %187 = vst.msk [vmem:[%s4 + $0x18] sm:$0xff] %vm183, %v155
    %188 = vst.msk [vmem:[%s4 + $0x20] sm:$0xff] %vm183, %v160
    %189 = vst.msk [vmem:[%s4 + $0x28] sm:$0xff] %vm183, %v165
    %190 = vst.msk [vmem:[%s4 + $0x30] sm:$0xff] %vm183, %v170
    %191 = vst.msk [vmem:[%s4 + $0x38] sm:$0xff] %vm183, %v175
    %192 = vst.msk [vmem:[%s4 + $0x40] sm:$0xff] %vm183, %v180
    %v193 = vld [vmem:[%s2] sm:$0xff]
    %v194 = vld [vmem:[%s2 + $0x8] sm:$0xff]
    %v195 = vld [vmem:[%s2 + $0x10] sm:$0xff]
    %v196 = vld [vmem:[%s2 + $0x18] sm:$0xff]
    %v197 = vld [vmem:[%s2 + $0x20] sm:$0xff]
    %v198 = vld [vmem:[%s2 + $0x28] sm:$0xff]
    %v199 = vld [vmem:[%s2 + $0x30] sm:$0xff]
    %v200 = vld [vmem:[%s2 + $0x38] sm:$0xff]
    %s201 = scalar_lea.vmem %s2, 64
    %v202 = vld [vmem:[%s201] sm:$0xff]
    %v203 = vld [vmem:[%s201 + $0x8] sm:$0xff]
    %v204 = vld [vmem:[%s201 + $0x10] sm:$0xff]
    %v205 = vld [vmem:[%s201 + $0x18] sm:$0xff]
    %v206 = vld [vmem:[%s201 + $0x20] sm:$0xff]
    %v207 = vld [vmem:[%s201 + $0x28] sm:$0xff]
    %v208 = vld [vmem:[%s201 + $0x30] sm:$0xff]
    %v209 = vld [vmem:[%s201 + $0x38] sm:$0xff]
    %v211 = vsel %vm183, %v145, 0
    %213 = vmatprep.subr.mxu0 0.0
    %214 = vmatpush1.msra.mxu0 %v202
    %215 = vmatprep.subr.mxu0 0.0
    %216 = vmatpush1.msra.mxu0 %v203
    %217 = vmatprep.subr.mxu0 0.0
    %218 = vmatpush1.msra.mxu0 %v204
    %219 = vmatprep.subr.mxu0 0.0
    %220 = vmatpush1.msra.mxu0 %v205
    %221 = vmatprep.subr.mxu0 0.0
    %222 = vmatpush1.msra.mxu0 %v206
    %223 = vmatprep.subr.mxu0 0.0
    %224 = vmatpush1.msra.mxu0 %v207
    %225 = vmatprep.subr.mxu0 0.0
    %226 = vmatpush1.msra.mxu0 %v208
    %227 = vmatprep.subr.mxu0 0.0
    %228 = vmatpush1.msra.mxu0 %v209
    %229 = vmatprep.subr.mxu0 0.0
    %230 = vmatpush1.msra.mxu0 0.0
    %231 = vmatprep.subr.mxu0 0.0
    %232 = vmatpush1.msra.mxu0 0.0
    %233 = vmatprep.subr.mxu0 0.0
    %234 = vmatpush1.msra.mxu0 0.0
    %235 = vmatprep.subr.mxu0 0.0
    %236 = vmatpush1.msra.mxu0 0.0
    %237 = vmatprep.subr.mxu0 0.0
    %238 = vmatpush1.msra.mxu0 0.0
    %239 = vmatprep.subr.mxu0 0.0
    %240 = vmatpush1.msra.mxu0 0.0
    %241 = vmatprep.subr.mxu0 0.0
    %242 = vmatpush1.msra.mxu0 0.0
    %243 = vmatprep.subr.mxu0 0.0
    %244 = vmatpush1.msra.mxu0 0.0
    %245 = vmatprep.subr.mxu0 0.0
    %246 = vmatpush1.msra.mxu0 0.0
    %247 = vmatprep.subr.mxu0 0.0
    %248 = vmatpush1.msra.mxu0 0.0
    %249 = vmatprep.subr.mxu0 0.0
    %250 = vmatpush1.msra.mxu0 0.0
    %251 = vmatprep.subr.mxu0 0.0
    %252 = vmatpush1.msra.mxu0 0.0
    %253 = vmatprep.subr.mxu0 0.0
    %254 = vmatpush1.msra.mxu0 0.0
    %255 = vmatprep.subr.mxu0 0.0
    %256 = vmatpush1.msra.mxu0 0.0
    %257 = vmatprep.subr.mxu0 0.0
    %258 = vmatpush1.msra.mxu0 0.0
    %259 = vmatprep.subr.mxu0 0.0
    %260 = vmatpush1.msra.mxu0 0.0
    %261 = vmatprep.subr.mxu0 0.0
    %262 = vmatpush1.msra.mxu0 0.0
    %263 = vmatprep.subr.mxu0 0.0
    %264 = vmatpush1.msra.mxu0 0.0
    %265 = vmatprep.subr.mxu0 0.0
    %266 = vmatpush1.msra.mxu0 0.0
    %267 = vmatprep.subr.mxu0 0.0
    %268 = vmatpush1.msra.mxu0 0.0
    %269 = vmatprep.subr.mxu0 0.0
    %270 = vmatpush1.msra.mxu0 0.0
    %271 = vmatprep.subr.mxu0 0.0
    %272 = vmatpush1.msra.mxu0 0.0
    %273 = vmatprep.subr.mxu0 0.0
    %274 = vmatpush1.msra.mxu0 0.0
    %275 = vmatprep.subr.mxu0 0.0
    %276 = vmatpush1.msra.mxu0 0.0
    %277 = vmatprep.mubr.f32.mxu0 0.0
    %278 = vmatmul.mubr.f32.gmra.mrb[0].mxu0 %v211
    %v279 = vpop.f32.mrb[0].mxu0
    %v280 = vadd.f32 0.0, %v279
    %v281 = vpop.f32.mrb[0].mxu0
    %282 = vdwg.mxu0
    %v284 = vsel %vm183, %v140, 0
    %286 = vmatprep.subr.mxu0 0.0
    %287 = vmatpush1.msra.mxu0 %v193
    %288 = vmatprep.subr.mxu0 0.0
    %289 = vmatpush1.msra.mxu0 %v194
    %290 = vmatprep.subr.mxu0 0.0
    %291 = vmatpush1.msra.mxu0 %v195
    %292 = vmatprep.subr.mxu0 0.0
    %293 = vmatpush1.msra.mxu0 %v196
    %294 = vmatprep.subr.mxu0 0.0
    %295 = vmatpush1.msra.mxu0 %v197
    %296 = vmatprep.subr.mxu0 0.0
    %297 = vmatpush1.msra.mxu0 %v198
    %298 = vmatprep.subr.mxu0 0.0
    %299 = vmatpush1.msra.mxu0 %v199
    %300 = vmatprep.subr.mxu0 0.0
    %301 = vmatpush1.msra.mxu0 %v200
    %302 = vmatprep.subr.mxu0 0.0
    %303 = vmatpush1.msra.mxu0 0.0
    %304 = vmatprep.subr.mxu0 0.0
    %305 = vmatpush1.msra.mxu0 0.0
    %306 = vmatprep.subr.mxu0 0.0
    %307 = vmatpush1.msra.mxu0 0.0
    %308 = vmatprep.subr.mxu0 0.0
    %309 = vmatpush1.msra.mxu0 0.0
    %310 = vmatprep.subr.mxu0 0.0
    %311 = vmatpush1.msra.mxu0 0.0
    %312 = vmatprep.subr.mxu0 0.0
    %313 = vmatpush1.msra.mxu0 0.0
    %314 = vmatprep.subr.mxu0 0.0
    %315 = vmatpush1.msra.mxu0 0.0
    %316 = vmatprep.subr.mxu0 0.0
    %317 = vmatpush1.msra.mxu0 0.0
    %318 = vmatprep.subr.mxu0 0.0
    %319 = vmatpush1.msra.mxu0 0.0
    %320 = vmatprep.subr.mxu0 0.0
    %321 = vmatpush1.msra.mxu0 0.0
    %322 = vmatprep.subr.mxu0 0.0
    %323 = vmatpush1.msra.mxu0 0.0
    %324 = vmatprep.subr.mxu0 0.0
    %325 = vmatpush1.msra.mxu0 0.0
    %326 = vmatprep.subr.mxu0 0.0
    %327 = vmatpush1.msra.mxu0 0.0
    %328 = vmatprep.subr.mxu0 0.0
    %329 = vmatpush1.msra.mxu0 0.0
    %330 = vmatprep.subr.mxu0 0.0
    %331 = vmatpush1.msra.mxu0 0.0
    %332 = vmatprep.subr.mxu0 0.0
    %333 = vmatpush1.msra.mxu0 0.0
    %334 = vmatprep.subr.mxu0 0.0
    %335 = vmatpush1.msra.mxu0 0.0
    %336 = vmatprep.subr.mxu0 0.0
    %337 = vmatpush1.msra.mxu0 0.0
    %338 = vmatprep.subr.mxu0 0.0
    %339 = vmatpush1.msra.mxu0 0.0
    %340 = vmatprep.subr.mxu0 0.0
    %341 = vmatpush1.msra.mxu0 0.0
    %342 = vmatprep.subr.mxu0 0.0
    %343 = vmatpush1.msra.mxu0 0.0
    %344 = vmatprep.subr.mxu0 0.0
    %345 = vmatpush1.msra.mxu0 0.0
    %346 = vmatprep.subr.mxu0 0.0
    %347 = vmatpush1.msra.mxu0 0.0
    %348 = vmatprep.subr.mxu0 0.0
    %349 = vmatpush1.msra.mxu0 0.0
    %350 = vmatprep.mubr.f32.mxu0 0.0
    %351 = vmatmul.mubr.f32.gmra.mrb[0].mxu0 %v284
    %v352 = vpop.f32.mrb[0].mxu0
    %v353 = vadd.f32 %v280, %v352
    %v354 = vpop.f32.mrb[0].mxu0
    %355 = vdwg.mxu0
    %s356 = scalar_lea.vmem %s2, 128
    %v357 = vld [vmem:[%s356] sm:$0xff]
    %v358 = vld [vmem:[%s356 + $0x8] sm:$0xff]
    %v359 = vld [vmem:[%s356 + $0x10] sm:$0xff]
    %v360 = vld [vmem:[%s356 + $0x18] sm:$0xff]
    %v361 = vld [vmem:[%s356 + $0x20] sm:$0xff]
    %v362 = vld [vmem:[%s356 + $0x28] sm:$0xff]
    %v363 = vld [vmem:[%s356 + $0x30] sm:$0xff]
    %v364 = vld [vmem:[%s356 + $0x38] sm:$0xff]
    %v366 = vsel %vm183, %v150, 0
    %368 = vmatprep.subr.mxu0 0.0
    %369 = vmatpush1.msra.mxu0 %v357
    %370 = vmatprep.subr.mxu0 0.0
    %371 = vmatpush1.msra.mxu0 %v358
    %372 = vmatprep.subr.mxu0 0.0
    %373 = vmatpush1.msra.mxu0 %v359
    %374 = vmatprep.subr.mxu0 0.0
    %375 = vmatpush1.msra.mxu0 %v360
    %376 = vmatprep.subr.mxu0 0.0
    %377 = vmatpush1.msra.mxu0 %v361
    %378 = vmatprep.subr.mxu0 0.0
    %379 = vmatpush1.msra.mxu0 %v362
    %380 = vmatprep.subr.mxu0 0.0
    %381 = vmatpush1.msra.mxu0 %v363
    %382 = vmatprep.subr.mxu0 0.0
    %383 = vmatpush1.msra.mxu0 %v364
    %384 = vmatprep.subr.mxu0 0.0
    %385 = vmatpush1.msra.mxu0 0.0
    %386 = vmatprep.subr.mxu0 0.0
    %387 = vmatpush1.msra.mxu0 0.0
    %388 = vmatprep.subr.mxu0 0.0
    %389 = vmatpush1.msra.mxu0 0.0
    %390 = vmatprep.subr.mxu0 0.0
    %391 = vmatpush1.msra.mxu0 0.0
    %392 = vmatprep.subr.mxu0 0.0
    %393 = vmatpush1.msra.mxu0 0.0
    %394 = vmatprep.subr.mxu0 0.0
    %395 = vmatpush1.msra.mxu0 0.0
    %396 = vmatprep.subr.mxu0 0.0
    %397 = vmatpush1.msra.mxu0 0.0
    %398 = vmatprep.subr.mxu0 0.0
    %399 = vmatpush1.msra.mxu0 0.0
    %400 = vmatprep.subr.mxu0 0.0
    %401 = vmatpush1.msra.mxu0 0.0
    %402 = vmatprep.subr.mxu0 0.0
    %403 = vmatpush1.msra.mxu0 0.0
    %404 = vmatprep.subr.mxu0 0.0
    %405 = vmatpush1.msra.mxu0 0.0
    %406 = vmatprep.subr.mxu0 0.0
    %407 = vmatpush1.msra.mxu0 0.0
    %408 = vmatprep.subr.mxu0 0.0
    %409 = vmatpush1.msra.mxu0 0.0
    %410 = vmatprep.subr.mxu0 0.0
    %411 = vmatpush1.msra.mxu0 0.0
    %412 = vmatprep.subr.mxu0 0.0
    %413 = vmatpush1.msra.mxu0 0.0
    %414 = vmatprep.subr.mxu0 0.0
    %415 = vmatpush1.msra.mxu0 0.0
    %416 = vmatprep.subr.mxu0 0.0
    %417 = vmatpush1.msra.mxu0 0.0
    %418 = vmatprep.subr.mxu0 0.0
    %419 = vmatpush1.msra.mxu0 0.0
    %420 = vmatprep.subr.mxu0 0.0
    %421 = vmatpush1.msra.mxu0 0.0
    %422 = vmatprep.subr.mxu0 0.0
    %423 = vmatpush1.msra.mxu0 0.0
    %424 = vmatprep.subr.mxu0 0.0
    %425 = vmatpush1.msra.mxu0 0.0
    %426 = vmatprep.subr.mxu0 0.0
    %427 = vmatpush1.msra.mxu0 0.0
    %428 = vmatprep.subr.mxu0 0.0
    %429 = vmatpush1.msra.mxu0 0.0
    %430 = vmatprep.subr.mxu0 0.0
    %431 = vmatpush1.msra.mxu0 0.0
    %432 = vmatprep.mubr.f32.mxu0 0.0
    %433 = vmatmul.mubr.f32.gmra.mrb[0].mxu0 %v366
    %v434 = vpop.f32.mrb[0].mxu0
    %v435 = vadd.f32 0.0, %v434
    %v436 = vpop.f32.mrb[0].mxu0
    %437 = vdwg.mxu0
    %v438 = vadd.f32 %v353, %v435
    %s439 = scalar_lea.vmem %s2, 192
    %v440 = vld [vmem:[%s439] sm:$0xff]
    %v441 = vld [vmem:[%s439 + $0x8] sm:$0xff]
    %v442 = vld [vmem:[%s439 + $0x10] sm:$0xff]
    %v443 = vld [vmem:[%s439 + $0x18] sm:$0xff]
    %v444 = vld [vmem:[%s439 + $0x20] sm:$0xff]
    %v445 = vld [vmem:[%s439 + $0x28] sm:$0xff]
    %v446 = vld [vmem:[%s439 + $0x30] sm:$0xff]
    %v447 = vld [vmem:[%s439 + $0x38] sm:$0xff]
    %v449 = vsel %vm183, %v155, 0
    %451 = vmatprep.subr.mxu0 0.0
    %452 = vmatpush1.msra.mxu0 %v440
    %453 = vmatprep.subr.mxu0 0.0
    %454 = vmatpush1.msra.mxu0 %v441
    %455 = vmatprep.subr.mxu0 0.0
    %456 = vmatpush1.msra.mxu0 %v442
    %457 = vmatprep.subr.mxu0 0.0
    %458 = vmatpush1.msra.mxu0 %v443
    %459 = vmatprep.subr.mxu0 0.0
    %460 = vmatpush1.msra.mxu0 %v444
    %461 = vmatprep.subr.mxu0 0.0
    %462 = vmatpush1.msra.mxu0 %v445
    %463 = vmatprep.subr.mxu0 0.0
    %464 = vmatpush1.msra.mxu0 %v446
    %465 = vmatprep.subr.mxu0 0.0
    %466 = vmatpush1.msra.mxu0 %v447
    %467 = vmatprep.subr.mxu0 0.0
    %468 = vmatpush1.msra.mxu0 0.0
    %469 = vmatprep.subr.mxu0 0.0
    %470 = vmatpush1.msra.mxu0 0.0
    %471 = vmatprep.subr.mxu0 0.0
    %472 = vmatpush1.msra.mxu0 0.0
    %473 = vmatprep.subr.mxu0 0.0
    %474 = vmatpush1.msra.mxu0 0.0
    %475 = vmatprep.subr.mxu0 0.0
    %476 = vmatpush1.msra.mxu0 0.0
    %477 = vmatprep.subr.mxu0 0.0
    %478 = vmatpush1.msra.mxu0 0.0
    %479 = vmatprep.subr.mxu0 0.0
    %480 = vmatpush1.msra.mxu0 0.0
    %481 = vmatprep.subr.mxu0 0.0
    %482 = vmatpush1.msra.mxu0 0.0
    %483 = vmatprep.subr.mxu0 0.0
    %484 = vmatpush1.msra.mxu0 0.0
    %485 = vmatprep.subr.mxu0 0.0
    %486 = vmatpush1.msra.mxu0 0.0
    %487 = vmatprep.subr.mxu0 0.0
    %488 = vmatpush1.msra.mxu0 0.0
    %489 = vmatprep.subr.mxu0 0.0
    %490 = vmatpush1.msra.mxu0 0.0
    %491 = vmatprep.subr.mxu0 0.0
    %492 = vmatpush1.msra.mxu0 0.0
    %493 = vmatprep.subr.mxu0 0.0
    %494 = vmatpush1.msra.mxu0 0.0
    %495 = vmatprep.subr.mxu0 0.0
    %496 = vmatpush1.msra.mxu0 0.0
    %497 = vmatprep.subr.mxu0 0.0
    %498 = vmatpush1.msra.mxu0 0.0
    %499 = vmatprep.subr.mxu0 0.0
    %500 = vmatpush1.msra.mxu0 0.0
    %501 = vmatprep.subr.mxu0 0.0
    %502 = vmatpush1.msra.mxu0 0.0
    %503 = vmatprep.subr.mxu0 0.0
    %504 = vmatpush1.msra.mxu0 0.0
    %505 = vmatprep.subr.mxu0 0.0
    %506 = vmatpush1.msra.mxu0 0.0
    %507 = vmatprep.subr.mxu0 0.0
    %508 = vmatpush1.msra.mxu0 0.0
    %509 = vmatprep.subr.mxu0 0.0
    %510 = vmatpush1.msra.mxu0 0.0
    %511 = vmatprep.subr.mxu0 0.0
    %512 = vmatpush1.msra.mxu0 0.0
    %513 = vmatprep.subr.mxu0 0.0
    %514 = vmatpush1.msra.mxu0 0.0
    %515 = vmatprep.mubr.f32.mxu0 0.0
    %516 = vmatmul.mubr.f32.gmra.mrb[0].mxu0 %v449
    %v517 = vpop.f32.mrb[0].mxu0
    %v518 = vadd.f32 0.0, %v517
    %v519 = vpop.f32.mrb[0].mxu0
    %520 = vdwg.mxu0
    %v521 = vadd.f32 %v438, %v518
    %s522 = scalar_lea.vmem %s2, 256
    %v523 = vld [vmem:[%s522] sm:$0xff]
    %v524 = vld [vmem:[%s522 + $0x8] sm:$0xff]
    %v525 = vld [vmem:[%s522 + $0x10] sm:$0xff]
    %v526 = vld [vmem:[%s522 + $0x18] sm:$0xff]
    %v527 = vld [vmem:[%s522 + $0x20] sm:$0xff]
    %v528 = vld [vmem:[%s522 + $0x28] sm:$0xff]
    %v529 = vld [vmem:[%s522 + $0x30] sm:$0xff]
    %v530 = vld [vmem:[%s522 + $0x38] sm:$0xff]
    %v532 = vsel %vm183, %v160, 0
    %534 = vmatprep.subr.mxu0 0.0
    %535 = vmatpush1.msra.mxu0 %v523
    %536 = vmatprep.subr.mxu0 0.0
    %537 = vmatpush1.msra.mxu0 %v524
    %538 = vmatprep.subr.mxu0 0.0
    %539 = vmatpush1.msra.mxu0 %v525
    %540 = vmatprep.subr.mxu0 0.0
    %541 = vmatpush1.msra.mxu0 %v526
    %542 = vmatprep.subr.mxu0 0.0
    %543 = vmatpush1.msra.mxu0 %v527
    %544 = vmatprep.subr.mxu0 0.0
    %545 = vmatpush1.msra.mxu0 %v528
    %546 = vmatprep.subr.mxu0 0.0
    %547 = vmatpush1.msra.mxu0 %v529
    %548 = vmatprep.subr.mxu0 0.0
    %549 = vmatpush1.msra.mxu0 %v530
    %550 = vmatprep.subr.mxu0 0.0
    %551 = vmatpush1.msra.mxu0 0.0
    %552 = vmatprep.subr.mxu0 0.0
    %553 = vmatpush1.msra.mxu0 0.0
    %554 = vmatprep.subr.mxu0 0.0
    %555 = vmatpush1.msra.mxu0 0.0
    %556 = vmatprep.subr.mxu0 0.0
    %557 = vmatpush1.msra.mxu0 0.0
    %558 = vmatprep.subr.mxu0 0.0
    %559 = vmatpush1.msra.mxu0 0.0
    %560 = vmatprep.subr.mxu0 0.0
    %561 = vmatpush1.msra.mxu0 0.0
    %562 = vmatprep.subr.mxu0 0.0
    %563 = vmatpush1.msra.mxu0 0.0
    %564 = vmatprep.subr.mxu0 0.0
    %565 = vmatpush1.msra.mxu0 0.0
    %566 = vmatprep.subr.mxu0 0.0
    %567 = vmatpush1.msra.mxu0 0.0
    %568 = vmatprep.subr.mxu0 0.0
    %569 = vmatpush1.msra.mxu0 0.0
    %570 = vmatprep.subr.mxu0 0.0
    %571 = vmatpush1.msra.mxu0 0.0
    %572 = vmatprep.subr.mxu0 0.0
    %573 = vmatpush1.msra.mxu0 0.0
    %574 = vmatprep.subr.mxu0 0.0
    %575 = vmatpush1.msra.mxu0 0.0
    %576 = vmatprep.subr.mxu0 0.0
    %577 = vmatpush1.msra.mxu0 0.0
    %578 = vmatprep.subr.mxu0 0.0
    %579 = vmatpush1.msra.mxu0 0.0
    %580 = vmatprep.subr.mxu0 0.0
    %581 = vmatpush1.msra.mxu0 0.0
    %582 = vmatprep.subr.mxu0 0.0
    %583 = vmatpush1.msra.mxu0 0.0
    %584 = vmatprep.subr.mxu0 0.0
    %585 = vmatpush1.msra.mxu0 0.0
    %586 = vmatprep.subr.mxu0 0.0
    %587 = vmatpush1.msra.mxu0 0.0
    %588 = vmatprep.subr.mxu0 0.0
    %589 = vmatpush1.msra.mxu0 0.0
    %590 = vmatprep.subr.mxu0 0.0
    %591 = vmatpush1.msra.mxu0 0.0
    %592 = vmatprep.subr.mxu0 0.0
    %593 = vmatpush1.msra.mxu0 0.0
    %594 = vmatprep.subr.mxu0 0.0
    %595 = vmatpush1.msra.mxu0 0.0
    %596 = vmatprep.subr.mxu0 0.0
    %597 = vmatpush1.msra.mxu0 0.0
    %598 = vmatprep.mubr.f32.mxu0 0.0
    %599 = vmatmul.mubr.f32.gmra.mrb[0].mxu0 %v532
    %v600 = vpop.f32.mrb[0].mxu0
    %v601 = vadd.f32 0.0, %v600
    %v602 = vpop.f32.mrb[0].mxu0
    %603 = vdwg.mxu0
    %v604 = vadd.f32 %v521, %v601
    %s605 = scalar_lea.vmem %s2, 320
    %v606 = vld [vmem:[%s605] sm:$0xff]
    %v607 = vld [vmem:[%s605 + $0x8] sm:$0xff]
    %v608 = vld [vmem:[%s605 + $0x10] sm:$0xff]
    %v609 = vld [vmem:[%s605 + $0x18] sm:$0xff]
    %v610 = vld [vmem:[%s605 + $0x20] sm:$0xff]
    %v611 = vld [vmem:[%s605 + $0x28] sm:$0xff]
    %v612 = vld [vmem:[%s605 + $0x30] sm:$0xff]
    %v613 = vld [vmem:[%s605 + $0x38] sm:$0xff]
    %v615 = vsel %vm183, %v165, 0
    %617 = vmatprep.subr.mxu0 0.0
    %618 = vmatpush1.msra.mxu0 %v606
    %619 = vmatprep.subr.mxu0 0.0
    %620 = vmatpush1.msra.mxu0 %v607
    %621 = vmatprep.subr.mxu0 0.0
    %622 = vmatpush1.msra.mxu0 %v608
    %623 = vmatprep.subr.mxu0 0.0
    %624 = vmatpush1.msra.mxu0 %v609
    %625 = vmatprep.subr.mxu0 0.0
    %626 = vmatpush1.msra.mxu0 %v610
    %627 = vmatprep.subr.mxu0 0.0
    %628 = vmatpush1.msra.mxu0 %v611
    %629 = vmatprep.subr.mxu0 0.0
    %630 = vmatpush1.msra.mxu0 %v612
    %631 = vmatprep.subr.mxu0 0.0
    %632 = vmatpush1.msra.mxu0 %v613
    %633 = vmatprep.subr.mxu0 0.0
    %634 = vmatpush1.msra.mxu0 0.0
    %635 = vmatprep.subr.mxu0 0.0
    %636 = vmatpush1.msra.mxu0 0.0
    %637 = vmatprep.subr.mxu0 0.0
    %638 = vmatpush1.msra.mxu0 0.0
    %639 = vmatprep.subr.mxu0 0.0
    %640 = vmatpush1.msra.mxu0 0.0
    %641 = vmatprep.subr.mxu0 0.0
    %642 = vmatpush1.msra.mxu0 0.0
    %643 = vmatprep.subr.mxu0 0.0
    %644 = vmatpush1.msra.mxu0 0.0
    %645 = vmatprep.subr.mxu0 0.0
    %646 = vmatpush1.msra.mxu0 0.0
    %647 = vmatprep.subr.mxu0 0.0
    %648 = vmatpush1.msra.mxu0 0.0
    %649 = vmatprep.subr.mxu0 0.0
    %650 = vmatpush1.msra.mxu0 0.0
    %651 = vmatprep.subr.mxu0 0.0
    %652 = vmatpush1.msra.mxu0 0.0
    %653 = vmatprep.subr.mxu0 0.0
    %654 = vmatpush1.msra.mxu0 0.0
    %655 = vmatprep.subr.mxu0 0.0
    %656 = vmatpush1.msra.mxu0 0.0
    %657 = vmatprep.subr.mxu0 0.0
    %658 = vmatpush1.msra.mxu0 0.0
    %659 = vmatprep.subr.mxu0 0.0
    %660 = vmatpush1.msra.mxu0 0.0
    %661 = vmatprep.subr.mxu0 0.0
    %662 = vmatpush1.msra.mxu0 0.0
    %663 = vmatprep.subr.mxu0 0.0
    %664 = vmatpush1.msra.mxu0 0.0
    %665 = vmatprep.subr.mxu0 0.0
    %666 = vmatpush1.msra.mxu0 0.0
    %667 = vmatprep.subr.mxu0 0.0
    %668 = vmatpush1.msra.mxu0 0.0
    %669 = vmatprep.subr.mxu0 0.0
    %670 = vmatpush1.msra.mxu0 0.0
    %671 = vmatprep.subr.mxu0 0.0
    %672 = vmatpush1.msra.mxu0 0.0
    %673 = vmatprep.subr.mxu0 0.0
    %674 = vmatpush1.msra.mxu0 0.0
    %675 = vmatprep.subr.mxu0 0.0
    %676 = vmatpush1.msra.mxu0 0.0
    %677 = vmatprep.subr.mxu0 0.0
    %678 = vmatpush1.msra.mxu0 0.0
    %679 = vmatprep.subr.mxu0 0.0
    %680 = vmatpush1.msra.mxu0 0.0
    %681 = vmatprep.mubr.f32.mxu0 0.0
    %682 = vmatmul.mubr.f32.gmra.mrb[0].mxu0 %v615
    %v683 = vpop.f32.mrb[0].mxu0
    %v684 = vadd.f32 0.0, %v683
    %v685 = vpop.f32.mrb[0].mxu0
    %686 = vdwg.mxu0
    %v687 = vadd.f32 %v604, %v684
    %s688 = scalar_lea.vmem %s2, 384
    %v689 = vld [vmem:[%s688] sm:$0xff]
    %v690 = vld [vmem:[%s688 + $0x8] sm:$0xff]
    %v691 = vld [vmem:[%s688 + $0x10] sm:$0xff]
    %v692 = vld [vmem:[%s688 + $0x18] sm:$0xff]
    %v693 = vld [vmem:[%s688 + $0x20] sm:$0xff]
    %v694 = vld [vmem:[%s688 + $0x28] sm:$0xff]
    %v695 = vld [vmem:[%s688 + $0x30] sm:$0xff]
    %v696 = vld [vmem:[%s688 + $0x38] sm:$0xff]
    %v698 = vsel %vm183, %v170, 0
    %700 = vmatprep.subr.mxu0 0.0
    %701 = vmatpush1.msra.mxu0 %v689
    %702 = vmatprep.subr.mxu0 0.0
    %703 = vmatpush1.msra.mxu0 %v690
    %704 = vmatprep.subr.mxu0 0.0
    %705 = vmatpush1.msra.mxu0 %v691
    %706 = vmatprep.subr.mxu0 0.0
    %707 = vmatpush1.msra.mxu0 %v692
    %708 = vmatprep.subr.mxu0 0.0
    %709 = vmatpush1.msra.mxu0 %v693
    %710 = vmatprep.subr.mxu0 0.0
    %711 = vmatpush1.msra.mxu0 %v694
    %712 = vmatprep.subr.mxu0 0.0
    %713 = vmatpush1.msra.mxu0 %v695
    %714 = vmatprep.subr.mxu0 0.0
    %715 = vmatpush1.msra.mxu0 %v696
    %716 = vmatprep.subr.mxu0 0.0
    %717 = vmatpush1.msra.mxu0 0.0
    %718 = vmatprep.subr.mxu0 0.0
    %719 = vmatpush1.msra.mxu0 0.0
    %720 = vmatprep.subr.mxu0 0.0
    %721 = vmatpush1.msra.mxu0 0.0
    %722 = vmatprep.subr.mxu0 0.0
    %723 = vmatpush1.msra.mxu0 0.0
    %724 = vmatprep.subr.mxu0 0.0
    %725 = vmatpush1.msra.mxu0 0.0
    %726 = vmatprep.subr.mxu0 0.0
    %727 = vmatpush1.msra.mxu0 0.0
    %728 = vmatprep.subr.mxu0 0.0
    %729 = vmatpush1.msra.mxu0 0.0
    %730 = vmatprep.subr.mxu0 0.0
    %731 = vmatpush1.msra.mxu0 0.0
    %732 = vmatprep.subr.mxu0 0.0
    %733 = vmatpush1.msra.mxu0 0.0
    %734 = vmatprep.subr.mxu0 0.0
    %735 = vmatpush1.msra.mxu0 0.0
    %736 = vmatprep.subr.mxu0 0.0
    %737 = vmatpush1.msra.mxu0 0.0
    %738 = vmatprep.subr.mxu0 0.0
    %739 = vmatpush1.msra.mxu0 0.0
    %740 = vmatprep.subr.mxu0 0.0
    %741 = vmatpush1.msra.mxu0 0.0
    %742 = vmatprep.subr.mxu0 0.0
    %743 = vmatpush1.msra.mxu0 0.0
    %744 = vmatprep.subr.mxu0 0.0
    %745 = vmatpush1.msra.mxu0 0.0
    %746 = vmatprep.subr.mxu0 0.0
    %747 = vmatpush1.msra.mxu0 0.0
    %748 = vmatprep.subr.mxu0 0.0
    %749 = vmatpush1.msra.mxu0 0.0
    %750 = vmatprep.subr.mxu0 0.0
    %751 = vmatpush1.msra.mxu0 0.0
    %752 = vmatprep.subr.mxu0 0.0
    %753 = vmatpush1.msra.mxu0 0.0
    %754 = vmatprep.subr.mxu0 0.0
    %755 = vmatpush1.msra.mxu0 0.0
    %756 = vmatprep.subr.mxu0 0.0
    %757 = vmatpush1.msra.mxu0 0.0
    %758 = vmatprep.subr.mxu0 0.0
    %759 = vmatpush1.msra.mxu0 0.0
    %760 = vmatprep.subr.mxu0 0.0
    %761 = vmatpush1.msra.mxu0 0.0
    %762 = vmatprep.subr.mxu0 0.0
    %763 = vmatpush1.msra.mxu0 0.0
    %764 = vmatprep.mubr.f32.mxu0 0.0
    %765 = vmatmul.mubr.f32.gmra.mrb[0].mxu0 %v698
    %v766 = vpop.f32.mrb[0].mxu0
    %v767 = vadd.f32 0.0, %v766
    %v768 = vpop.f32.mrb[0].mxu0
    %769 = vdwg.mxu0
    %v770 = vadd.f32 %v687, %v767
    %s771 = scalar_lea.vmem %s2, 448
    %v772 = vld [vmem:[%s771] sm:$0xff]
    %v773 = vld [vmem:[%s771 + $0x8] sm:$0xff]
    %v774 = vld [vmem:[%s771 + $0x10] sm:$0xff]
    %v775 = vld [vmem:[%s771 + $0x18] sm:$0xff]
    %v776 = vld [vmem:[%s771 + $0x20] sm:$0xff]
    %v777 = vld [vmem:[%s771 + $0x28] sm:$0xff]
    %v778 = vld [vmem:[%s771 + $0x30] sm:$0xff]
    %v779 = vld [vmem:[%s771 + $0x38] sm:$0xff]
    %v781 = vsel %vm183, %v175, 0
    %783 = vmatprep.subr.mxu0 0.0
    %784 = vmatpush1.msra.mxu0 %v772
    %785 = vmatprep.subr.mxu0 0.0
    %786 = vmatpush1.msra.mxu0 %v773
    %787 = vmatprep.subr.mxu0 0.0
    %788 = vmatpush1.msra.mxu0 %v774
    %789 = vmatprep.subr.mxu0 0.0
    %790 = vmatpush1.msra.mxu0 %v775
    %791 = vmatprep.subr.mxu0 0.0
    %792 = vmatpush1.msra.mxu0 %v776
    %793 = vmatprep.subr.mxu0 0.0
    %794 = vmatpush1.msra.mxu0 %v777
    %795 = vmatprep.subr.mxu0 0.0
    %796 = vmatpush1.msra.mxu0 %v778
    %797 = vmatprep.subr.mxu0 0.0
    %798 = vmatpush1.msra.mxu0 %v779
    %799 = vmatprep.subr.mxu0 0.0
    %800 = vmatpush1.msra.mxu0 0.0
    %801 = vmatprep.subr.mxu0 0.0
    %802 = vmatpush1.msra.mxu0 0.0
    %803 = vmatprep.subr.mxu0 0.0
    %804 = vmatpush1.msra.mxu0 0.0
    %805 = vmatprep.subr.mxu0 0.0
    %806 = vmatpush1.msra.mxu0 0.0
    %807 = vmatprep.subr.mxu0 0.0
    %808 = vmatpush1.msra.mxu0 0.0
    %809 = vmatprep.subr.mxu0 0.0
    %810 = vmatpush1.msra.mxu0 0.0
    %811 = vmatprep.subr.mxu0 0.0
    %812 = vmatpush1.msra.mxu0 0.0
    %813 = vmatprep.subr.mxu0 0.0
    %814 = vmatpush1.msra.mxu0 0.0
    %815 = vmatprep.subr.mxu0 0.0
    %816 = vmatpush1.msra.mxu0 0.0
    %817 = vmatprep.subr.mxu0 0.0
    %818 = vmatpush1.msra.mxu0 0.0
    %819 = vmatprep.subr.mxu0 0.0
    %820 = vmatpush1.msra.mxu0 0.0
    %821 = vmatprep.subr.mxu0 0.0
    %822 = vmatpush1.msra.mxu0 0.0
    %823 = vmatprep.subr.mxu0 0.0
    %824 = vmatpush1.msra.mxu0 0.0
    %825 = vmatprep.subr.mxu0 0.0
    %826 = vmatpush1.msra.mxu0 0.0
    %827 = vmatprep.subr.mxu0 0.0
    %828 = vmatpush1.msra.mxu0 0.0
    %829 = vmatprep.subr.mxu0 0.0
    %830 = vmatpush1.msra.mxu0 0.0
    %831 = vmatprep.subr.mxu0 0.0
    %832 = vmatpush1.msra.mxu0 0.0
    %833 = vmatprep.subr.mxu0 0.0
    %834 = vmatpush1.msra.mxu0 0.0
    %835 = vmatprep.subr.mxu0 0.0
    %836 = vmatpush1.msra.mxu0 0.0
    %837 = vmatprep.subr.mxu0 0.0
    %838 = vmatpush1.msra.mxu0 0.0
    %839 = vmatprep.subr.mxu0 0.0
    %840 = vmatpush1.msra.mxu0 0.0
    %841 = vmatprep.subr.mxu0 0.0
    %842 = vmatpush1.msra.mxu0 0.0
    %843 = vmatprep.subr.mxu0 0.0
    %844 = vmatpush1.msra.mxu0 0.0
    %845 = vmatprep.subr.mxu0 0.0
    %846 = vmatpush1.msra.mxu0 0.0
    %847 = vmatprep.mubr.f32.mxu0 0.0
    %848 = vmatmul.mubr.f32.gmra.mrb[0].mxu0 %v781
    %v849 = vpop.f32.mrb[0].mxu0
    %v850 = vadd.f32 0.0, %v849
    %v851 = vpop.f32.mrb[0].mxu0
    %852 = vdwg.mxu0
    %v853 = vadd.f32 %v770, %v850
    %s854 = scalar_lea.vmem %s2, 512
    %v855 = vld [vmem:[%s854] sm:$0xff]
    %v856 = vld [vmem:[%s854 + $0x8] sm:$0xff]
    %v857 = vld [vmem:[%s854 + $0x10] sm:$0xff]
    %v858 = vld [vmem:[%s854 + $0x18] sm:$0xff]
    %v859 = vld [vmem:[%s854 + $0x20] sm:$0xff]
    %v860 = vld [vmem:[%s854 + $0x28] sm:$0xff]
    %v861 = vld [vmem:[%s854 + $0x30] sm:$0xff]
    %v862 = vld [vmem:[%s854 + $0x38] sm:$0xff]
    %v864 = vsel %vm183, %v180, 0
    %866 = vmatprep.subr.mxu0 0.0
    %867 = vmatpush1.msra.mxu0 %v855
    %868 = vmatprep.subr.mxu0 0.0
    %869 = vmatpush1.msra.mxu0 %v856
    %870 = vmatprep.subr.mxu0 0.0
    %871 = vmatpush1.msra.mxu0 %v857
    %872 = vmatprep.subr.mxu0 0.0
    %873 = vmatpush1.msra.mxu0 %v858
    %874 = vmatprep.subr.mxu0 0.0
    %875 = vmatpush1.msra.mxu0 %v859
    %876 = vmatprep.subr.mxu0 0.0
    %877 = vmatpush1.msra.mxu0 %v860
    %878 = vmatprep.subr.mxu0 0.0
    %879 = vmatpush1.msra.mxu0 %v861
    %880 = vmatprep.subr.mxu0 0.0
    %881 = vmatpush1.msra.mxu0 %v862
    %882 = vmatprep.subr.mxu0 0.0
    %883 = vmatpush1.msra.mxu0 0.0
    %884 = vmatprep.subr.mxu0 0.0
    %885 = vmatpush1.msra.mxu0 0.0
    %886 = vmatprep.subr.mxu0 0.0
    %887 = vmatpush1.msra.mxu0 0.0
    %888 = vmatprep.subr.mxu0 0.0
    %889 = vmatpush1.msra.mxu0 0.0
    %890 = vmatprep.subr.mxu0 0.0
    %891 = vmatpush1.msra.mxu0 0.0
    %892 = vmatprep.subr.mxu0 0.0
    %893 = vmatpush1.msra.mxu0 0.0
    %894 = vmatprep.subr.mxu0 0.0
    %895 = vmatpush1.msra.mxu0 0.0
    %896 = vmatprep.subr.mxu0 0.0
    %897 = vmatpush1.msra.mxu0 0.0
    %898 = vmatprep.subr.mxu0 0.0
    %899 = vmatpush1.msra.mxu0 0.0
    %900 = vmatprep.subr.mxu0 0.0
    %901 = vmatpush1.msra.mxu0 0.0
    %902 = vmatprep.subr.mxu0 0.0
    %903 = vmatpush1.msra.mxu0 0.0
    %904 = vmatprep.subr.mxu0 0.0
    %905 = vmatpush1.msra.mxu0 0.0
    %906 = vmatprep.subr.mxu0 0.0
    %907 = vmatpush1.msra.mxu0 0.0
    %908 = vmatprep.subr.mxu0 0.0
    %909 = vmatpush1.msra.mxu0 0.0
    %910 = vmatprep.subr.mxu0 0.0
    %911 = vmatpush1.msra.mxu0 0.0
    %912 = vmatprep.subr.mxu0 0.0
    %913 = vmatpush1.msra.mxu0 0.0
    %914 = vmatprep.subr.mxu0 0.0
    %915 = vmatpush1.msra.mxu0 0.0
    %916 = vmatprep.subr.mxu0 0.0
    %917 = vmatpush1.msra.mxu0 0.0
    %918 = vmatprep.subr.mxu0 0.0
    %919 = vmatpush1.msra.mxu0 0.0
    %920 = vmatprep.subr.mxu0 0.0
    %921 = vmatpush1.msra.mxu0 0.0
    %922 = vmatprep.subr.mxu0 0.0
    %923 = vmatpush1.msra.mxu0 0.0
    %924 = vmatprep.subr.mxu0 0.0
    %925 = vmatpush1.msra.mxu0 0.0
    %926 = vmatprep.subr.mxu0 0.0
    %927 = vmatpush1.msra.mxu0 0.0
    %928 = vmatprep.subr.mxu0 0.0
    %929 = vmatpush1.msra.mxu0 0.0
    %930 = vmatprep.mubr.f32.mxu0 0.0
    %931 = vmatmul.mubr.f32.gmra.mrb[0].mxu0 %v864
    %v932 = vpop.f32.mrb[0].mxu0
    %v933 = vadd.f32 0.0, %v932
    %v934 = vpop.f32.mrb[0].mxu0
    %935 = vdwg.mxu0
    %v936 = vadd.f32 %v853, %v933
    %937 = vst.msk [vmem:[#allocation2] sm:$0xff] %vm183, %v936
    %v938 = vld [vmem:[%s3] sm:$0xff]
    %v939 = vld [vmem:[%s3 + $0x8] sm:$0xff]
    %v940 = vld [vmem:[%s3 + $0x10] sm:$0xff]
    %v941 = vld [vmem:[%s3 + $0x18] sm:$0xff]
    %v942 = vld [vmem:[%s3 + $0x20] sm:$0xff]
    %v943 = vld [vmem:[%s3 + $0x28] sm:$0xff]
    %v944 = vld [vmem:[%s3 + $0x30] sm:$0xff]
    %v945 = vld [vmem:[%s3 + $0x38] sm:$0xff]
    %v947 = vsel %vm183, %v936, 0
    %949 = vmatprep.subr.mxu0 0.0
    %950 = vmatpush1.msra.mxu0 %v938
    %951 = vmatprep.subr.mxu0 0.0
    %952 = vmatpush1.msra.mxu0 %v939
    %953 = vmatprep.subr.mxu0 0.0
    %954 = vmatpush1.msra.mxu0 %v940
    %955 = vmatprep.subr.mxu0 0.0
    %956 = vmatpush1.msra.mxu0 %v941
    %957 = vmatprep.subr.mxu0 0.0
    %958 = vmatpush1.msra.mxu0 %v942
    %959 = vmatprep.subr.mxu0 0.0
    %960 = vmatpush1.msra.mxu0 %v943
    %961 = vmatprep.subr.mxu0 0.0
    %962 = vmatpush1.msra.mxu0 %v944
    %963 = vmatprep.subr.mxu0 0.0
    %964 = vmatpush1.msra.mxu0 %v945
    %965 = vmatprep.subr.mxu0 0.0
    %966 = vmatpush1.msra.mxu0 0.0
    %967 = vmatprep.subr.mxu0 0.0
    %968 = vmatpush1.msra.mxu0 0.0
    %969 = vmatprep.subr.mxu0 0.0
    %970 = vmatpush1.msra.mxu0 0.0
    %971 = vmatprep.subr.mxu0 0.0
    %972 = vmatpush1.msra.mxu0 0.0
    %973 = vmatprep.subr.mxu0 0.0
    %974 = vmatpush1.msra.mxu0 0.0
    %975 = vmatprep.subr.mxu0 0.0
    %976 = vmatpush1.msra.mxu0 0.0
    %977 = vmatprep.subr.mxu0 0.0
    %978 = vmatpush1.msra.mxu0 0.0
    %979 = vmatprep.subr.mxu0 0.0
    %980 = vmatpush1.msra.mxu0 0.0
    %981 = vmatprep.subr.mxu0 0.0
    %982 = vmatpush1.msra.mxu0 0.0
    %983 = vmatprep.subr.mxu0 0.0
    %984 = vmatpush1.msra.mxu0 0.0
    %985 = vmatprep.subr.mxu0 0.0
    %986 = vmatpush1.msra.mxu0 0.0
    %987 = vmatprep.subr.mxu0 0.0
    %988 = vmatpush1.msra.mxu0 0.0
    %989 = vmatprep.subr.mxu0 0.0
    %990 = vmatpush1.msra.mxu0 0.0
    %991 = vmatprep.subr.mxu0 0.0
    %992 = vmatpush1.msra.mxu0 0.0
    %993 = vmatprep.subr.mxu0 0.0
    %994 = vmatpush1.msra.mxu0 0.0
    %995 = vmatprep.subr.mxu0 0.0
    %996 = vmatpush1.msra.mxu0 0.0
    %997 = vmatprep.subr.mxu0 0.0
    %998 = vmatpush1.msra.mxu0 0.0
    %999 = vmatprep.subr.mxu0 0.0
    %1000 = vmatpush1.msra.mxu0 0.0
    %1001 = vmatprep.subr.mxu0 0.0
    %1002 = vmatpush1.msra.mxu0 0.0
    %1003 = vmatprep.subr.mxu0 0.0
    %1004 = vmatpush1.msra.mxu0 0.0
    %1005 = vmatprep.subr.mxu0 0.0
    %1006 = vmatpush1.msra.mxu0 0.0
    %1007 = vmatprep.subr.mxu0 0.0
    %1008 = vmatpush1.msra.mxu0 0.0
    %1009 = vmatprep.subr.mxu0 0.0
    %1010 = vmatpush1.msra.mxu0 0.0
    %1011 = vmatprep.subr.mxu0 0.0
    %1012 = vmatpush1.msra.mxu0 0.0
    %1013 = vmatprep.mubr.f32.mxu0 0.0
    %1014 = vmatmul.mubr.f32.gmra.mrb[0].mxu0 %v947
    %v1015 = vpop.f32.mrb[0].mxu0
    %v1016 = vadd.f32 0.0, %v1015
    %v1017 = vpop.f32.mrb[0].mxu0
    %1018 = vdwg.mxu0
    %vm1019 = vcmask 130048
    %1020 = vst.msk [vmem:[#allocation4] sm:$0xff] %vm1019, %v1016
    // Predicated region
    $region18: #{net_forward.1} parent=1 // pred_check
      _
    $region19: #{net_forward.1} parent=1 // pred_check_branch
      %1022 = sbr.rel (0) target = $region21
    $region20: #{net_forward.1} parent=1 // pred_region
      _
    $region21: #{net_forward.1} parent=1 // pred_fallthru
      _
    // Predicated region
    $region22: #{net_forward.1} parent=1 // pred_check
      _
    $region23: #{net_forward.1} parent=1 // pred_check_branch
      %1024 = sbr.rel (0) target = $region25
    $region24: #{net_forward.1} parent=1 // pred_region
      %s1026 = ssub.s32 128, 128
      %1027 = vsyncadd [#allocation3], %s1026
      %s1029 = sshll.u32 [#allocation2], 4
      %s1030 = int_to_ptr.vmem [resolvable:$true] %s1029
      %1032 = dma.vmem_to_hbm [thread:$0]  %s1030, 128, %s5, [#allocation3]
    $region25: #{net_forward.1} parent=1 // pred_fallthru
      _
    // Predicated region
    $region26: #{net_forward.1} parent=1 // pred_check
      _
    $region27: #{net_forward.1} parent=1 // pred_check_branch
      %1034 = sbr.rel (0) target = $region29
    $region28: #{net_forward.1} parent=1 // pred_region
      %s1036 = ssub.s32 128, 128
      %1037 = vsyncadd [#allocation5], %s1036
      %s1039 = sshll.u32 [#allocation4], 4
      %s1040 = int_to_ptr.vmem [resolvable:$true] %s1039
      %1042 = dma.vmem_to_hbm [thread:$0]  %s1040, 128, %s6, [#allocation5]
    $region29: #{net_forward.1} parent=1 // pred_fallthru
      _
    // Predicated region
    $region30: #{net_forward.1} parent=1 // pred_check
      _
    $region31: #{net_forward.1} parent=1 // pred_check_branch
      %1044 = sbr.rel (0) target = $region33
    $region32: #{net_forward.1} parent=1 // pred_region
      _
    $region33: #{net_forward.1} parent=1 // pred_fallthru
      _
    // Predicated region
    $region34: #{net_forward.1} parent=1 // pred_check
      _
    $region35: #{net_forward.1} parent=1 // pred_check_branch
      %1046 = sbr.rel (0) target = $region37
    $region36: #{net_forward.1} parent=1 // pred_region
      %1047 = dma.done [#allocation3], 128
    $region37: #{net_forward.1} parent=1 // pred_fallthru
      _
    // Predicated region
    $region38: #{net_forward.1} parent=1 // pred_check
      _
    $region39: #{net_forward.1} parent=1 // pred_check_branch
      %1049 = sbr.rel (0) target = $region41
    $region40: #{net_forward.1} parent=1 // pred_region
      %1050 = dma.done [#allocation5], 128
    $region41: #{net_forward.1} parent=1 // pred_fallthru
      _
    %1051 = vsyncpa [#allocation3], 1
    %1052 = vsyncpa [#allocation5], 1

</llo_original>
